<compile_context>
chip_gen: v5e
topology: v5e:2x2
jax: 0.10.0
libtpu: 0.0.40
codegen_flags: <defaults>
</compile_context>

<pallas_src>
import functools
import math

import jax
import jax.numpy as jnp
from jax.experimental import pallas as pl
from jax.experimental.pallas import tpu as pltpu

NEG_SLOPE = 0.2  # LeakyReLU negative slope


def _leaky_relu(x):
    # max(x, 0.2*x): one mul + one max on the VPU.
    return jnp.maximum(x, NEG_SLOPE * x)


def _fused_encoder_kernel(le_ref, lo_ref, w1_ref, b1_ref, w2_ref, b2_ref,
                          wl_ref, bl_ref, out_ref, *, l2):
    """conv1 + LeakyReLU + conv2 + LeakyReLU + Linear for one flattened row tile.

    le_ref / lo_ref : (M, 4*Cin) bf16 im2col rows of conv1 at even / odd output
                      positions, M = batch_tile * l2 flattened (batch, time) rows.
    w1_ref : (4*Cin, H)  bf16   b1_ref : (1, H)    f32
    w2_ref : (4*H, Cout) bf16   b2_ref : (1, Cout) f32
    wl_ref : (Cout, Dout) bf16  bl_ref : (1, Dout) f32
    out_ref: (M, Dout) f32
    """
    m = out_ref.shape[0]

    # ---- layer 1: Conv1d(Cin->H, k=4, s=2, p=1) + LeakyReLU (K = 4*Cin) -----
    w1 = w1_ref[...]
    he = _leaky_relu(jnp.dot(le_ref[...], w1,
                             preferred_element_type=jnp.float32) + b1_ref[...])
    ho = _leaky_relu(jnp.dot(lo_ref[...], w1,
                             preferred_element_type=jnp.float32) + b1_ref[...])
    # he[t] = h[2t], ho[t] = h[2t+1]  (per batch element, rows flattened).

    # ---- layer 2 im2col, built entirely in VMEM/vregs (h never hits HBM) ----
    # conv2 output row t needs h_pad rows [2t-1, 2t, 2t+1, 2t+2]
    #   = [ho[t-1], he[t], ho[t], he[t+1]] with zeros at each element's edges.
    t_idx = jax.lax.broadcasted_iota(jnp.int32, (m, 1), 0) % l2
    ho_prev = jnp.where(t_idx == 0, 0.0, pltpu.roll(ho, 1, axis=0))
    he_next = jnp.where(t_idx == l2 - 1, 0.0, pltpu.roll(he, m - 1, axis=0))
    lhs2 = jnp.concatenate([ho_prev, he, ho, he_next],
                           axis=-1).astype(jnp.bfloat16)           # (M, 4*H)

    # ---- layer 2: Conv1d(H->Cout, k=4, s=2, p=1) + LeakyReLU (K = 4*H) ------
    y = _leaky_relu(jnp.dot(lhs2, w2_ref[...],
                            preferred_element_type=jnp.float32) + b2_ref[...])

    # ---- out_net Linear(Cout -> Dout), fused on the MXU ---------------------
    out = jnp.dot(y.astype(jnp.bfloat16), wl_ref[...],
                  preferred_element_type=jnp.float32) + bl_ref[...]
    out_ref[...] = out.astype(out_ref.dtype)


def _pick_batch_tile(batch, l2, target_rows=512):
    """Largest batch tile whose flattened row count is layout-legal and MXU-sized."""
    legal = [tb for tb in range(1, batch + 1)
             if batch % tb == 0 and ((tb * l2) % 8 == 0 or tb == batch)]
    # Prefer >=2 grid steps (feeds both v7x TensorCores) once M is already >=128.
    split = [tb for tb in legal if batch // tb >= 2 and 128 <= tb * l2 <= target_rows]
    if split:
        return max(split)
    under = [tb for tb in legal if tb * l2 <= target_rows]
    return max(under) if under else min(legal)


def movement_conv_encoder(x, params, *, batch_tile=None, interpret=False):
    """x: (B, T, input_size) -> (B, T // 4, output_size), eval-mode forward."""
    B, T, Cin = x.shape
    assert T % 4 == 0, "sequence length must be a multiple of 4 (two stride-2 convs)"
    L1, L2 = T // 2, T // 4
    H = params["w1"].shape[0]
    Cout = params["w2"].shape[0]
    Dout = params["wl"].shape[0]
    assert params["w1"].shape == (H, Cin, 4)
    assert params["w2"].shape == (Cout, H, 4)
    assert params["wl"].shape == (Dout, Cout)

    # --- thin XLA glue: layer-1 im2col (taps stacked along lanes), split into
    #     even / odd conv-1 output rows, flattened to (B*L2, 4*Cin), cast bf16.
    x_pad = jnp.pad(x, ((0, 0), (1, 1), (0, 0)))                      # (B, T+2, Cin)
    win = jnp.concatenate(
        [x_pad[:, k:k + 2 * L1:2, :] for k in range(4)], axis=-1)     # (B, L1, 4Cin)
    lhs_e = win[:, 0::2, :].reshape(B * L2, 4 * Cin).astype(jnp.bfloat16)
    lhs_o = win[:, 1::2, :].reshape(B * L2, 4 * Cin).astype(jnp.bfloat16)

    # --- stacked bf16 weights: tap axis folded into the contraction dim ------
    w1s = jnp.concatenate([params["w1"][:, :, k].T for k in range(4)],
                          axis=0).astype(jnp.bfloat16)                # (4Cin, H)
    w2s = jnp.concatenate([params["w2"][:, :, k].T for k in range(4)],
                          axis=0).astype(jnp.bfloat16)                # (4H, Cout)
    wl_t = params["wl"].T.astype(jnp.bfloat16)                        # (Cout, Dout)
    b1 = params["b1"].reshape(1, H).astype(jnp.float32)
    b2 = params["b2"].reshape(1, Cout).astype(jnp.float32)
    bl = params["bl"].reshape(1, Dout).astype(jnp.float32)

    tb = batch_tile if batch_tile is not None else _pick_batch_tile(B, L2)
    assert B % tb == 0
    M = tb * L2

    row_spec = pl.BlockSpec((M, 4 * Cin), lambda i: (i, 0))
    out_spec = pl.BlockSpec((M, Dout), lambda i: (i, 0))

    def const(shape):
        return pl.BlockSpec(shape, lambda i: (0, 0))

    out_flat = pl.pallas_call(
        functools.partial(_fused_encoder_kernel, l2=L2),
        grid=(B // tb,),
        in_specs=[row_spec, row_spec,
                  const(w1s.shape), const(b1.shape),
                  const(w2s.shape), const(b2.shape),
                  const(wl_t.shape), const(bl.shape)],
        out_specs=out_spec,
        out_shape=jax.ShapeDtypeStruct((B * L2, Dout), jnp.float32),
        compiler_params=pltpu.CompilerParams(
            dimension_semantics=("parallel",)),
        interpret=interpret,
    )(lhs_e, lhs_o, w1s, b1, w2s, b2, wl_t, bl)

    return out_flat.reshape(B, L2, Dout)


def movement_conv_encoder_ref(x, params):
    """Pure-JAX f32 reference mirroring the PyTorch forward (eval-mode dropout)."""
    def conv(x_ncl, w, b):
        y = jax.lax.conv_general_dilated(
            x_ncl, w, window_strides=(2,), padding=[(1, 1)],
            dimension_numbers=("NCH", "OIH", "NCH"),
            precision=jax.lax.Precision.HIGHEST)
        return y + b[None, :, None]

    def lrelu(v):
        return jnp.where(v >= 0, v, NEG_SLOPE * v)

    h = lrelu(conv(jnp.transpose(x, (0, 2, 1)), params["w1"], params["b1"]))
    y = lrelu(conv(h, params["w2"], params["b2"]))
    y = jnp.transpose(y, (0, 2, 1))                                   # (B, T/4, Cout)
    out = jnp.einsum("blc,dc->bld", y, params["wl"], precision="highest")
    return out + params["bl"]


if __name__ == "__main__":
    key = jax.random.PRNGKey(0)
    ks = jax.random.split(key, 7)

    B, T = 2, 16
    input_size, hidden_size, output_size = 8, 16, 8

    def xavier(k, shape, fan_in, fan_out):
        std = math.sqrt(2.0 / (fan_in + fan_out))
        return std * jax.random.normal(k, shape, dtype=jnp.float32)

    params = {
        "w1": xavier(ks[0], (hidden_size, input_size, 4),
                     input_size * 4, hidden_size * 4),
        "b1": 0.1 * jax.random.normal(ks[1], (hidden_size,), dtype=jnp.float32),
        "w2": xavier(ks[2], (output_size, hidden_size, 4),
                     hidden_size * 4, output_size * 4),
        "b2": 0.1 * jax.random.normal(ks[3], (output_size,), dtype=jnp.float32),
        "wl": xavier(ks[4], (output_size, output_size), output_size, output_size),
        "bl": 0.1 * jax.random.normal(ks[5], (output_size,), dtype=jnp.float32),
    }
    x = jax.random.normal(ks[6], (B, T, input_size), dtype=jnp.float32)

    out = movement_conv_encoder(x, params)
    jax.block_until_ready(out)

    ref = movement_conv_encoder_ref(x, params)
    assert out.shape == (B, T // 4, output_size), out.shape
    # bf16 MXU operands (f32 accumulation) => relaxed tolerance vs f32 reference.
    max_err = float(jnp.max(jnp.abs(out - ref)))
    assert max_err < 5e-2, (max_err, out, ref)

    print("KERNEL_OK")
</pallas_src>

<mosaic_0001>
module attributes {stable_mosaic.version = 11 : i64} {
  func.func @_fused_encoder_kernel(%arg0: i32, %arg1: memref<8x32xbf16, #tpu.memory_space<vmem>>, %arg2: memref<8x32xbf16, #tpu.memory_space<vmem>>, %arg3: memref<32x16xbf16, #tpu.memory_space<vmem>>, %arg4: memref<1x16xf32, #tpu.memory_space<vmem>>, %arg5: memref<64x8xbf16, #tpu.memory_space<vmem>>, %arg6: memref<1x8xf32, #tpu.memory_space<vmem>>, %arg7: memref<8x8xbf16, #tpu.memory_space<vmem>>, %arg8: memref<1x8xf32, #tpu.memory_space<vmem>>, %arg9: memref<8x8xf32, #tpu.memory_space<vmem>>) attributes {dimension_semantics = [#tpu.dimension_semantics<parallel>], iteration_bounds = array<i64: 1>, scalar_prefetch = 0 : i64, scratch_operands = 0 : i64, tpu.core_type = #tpu.core_type<tc>, window_params = [{transform_indices = @transform_0, window_bounds = array<i64: 8, 32>}, {transform_indices = @transform_1, window_bounds = array<i64: 8, 32>}, {pipeline_mode = #tpu.pipeline_mode<synchronous>, transform_indices = @transform_2, window_bounds = array<i64: 32, 16>}, {pipeline_mode = #tpu.pipeline_mode<synchronous>, transform_indices = @transform_3, window_bounds = array<i64: 1, 16>}, {pipeline_mode = #tpu.pipeline_mode<synchronous>, transform_indices = @transform_4, window_bounds = array<i64: 64, 8>}, {pipeline_mode = #tpu.pipeline_mode<synchronous>, transform_indices = @transform_5, window_bounds = array<i64: 1, 8>}, {pipeline_mode = #tpu.pipeline_mode<synchronous>, transform_indices = @transform_6, window_bounds = array<i64: 8, 8>}, {pipeline_mode = #tpu.pipeline_mode<synchronous>, transform_indices = @transform_7, window_bounds = array<i64: 1, 8>}, {transform_indices = @transform_8, window_bounds = array<i64: 8, 8>}]} {
    %c0 = arith.constant 0 : index
    %c0_0 = arith.constant 0 : index
    %0 = vector.load %arg3[%c0, %c0_0] : memref<32x16xbf16, #tpu.memory_space<vmem>>, vector<32x16xbf16>
    %c0_1 = arith.constant 0 : index
    %c0_2 = arith.constant 0 : index
    %1 = vector.load %arg1[%c0_1, %c0_2] : memref<8x32xbf16, #tpu.memory_space<vmem>>, vector<8x32xbf16>
    %cst = arith.constant dense<0.000000e+00> : vector<8x16xf32>
    %2 = tpu.matmul %1, %0, %cst {dimension_numbers = #tpu.dot_dimension_numbers<[1], [0], [0], [1], [0, 0, 1, 1], [], []>} : vector<8x32xbf16>, vector<32x16xbf16>, vector<8x16xf32> -> vector<8x16xf32>
    %c0_3 = arith.constant 0 : index
    %c0_4 = arith.constant 0 : index
    %3 = vector.load %arg4[%c0_3, %c0_4] : memref<1x16xf32, #tpu.memory_space<vmem>>, vector<1x16xf32>
    %4 = vector.broadcast %3 : vector<1x16xf32> to vector<8x16xf32>
    %5 = arith.addf %2, %4 : vector<8x16xf32>
    %cst_5 = arith.constant 2.000000e-01 : f32
    %6 = vector.broadcast %cst_5 : f32 to vector<8x16xf32>
    %7 = arith.mulf %6, %5 : vector<8x16xf32>
    %8 = arith.maximumf %5, %7 : vector<8x16xf32>
    %c0_6 = arith.constant 0 : index
    %c0_7 = arith.constant 0 : index
    %9 = vector.load %arg2[%c0_6, %c0_7] : memref<8x32xbf16, #tpu.memory_space<vmem>>, vector<8x32xbf16>
    %cst_8 = arith.constant dense<0.000000e+00> : vector<8x16xf32>
    %10 = tpu.matmul %9, %0, %cst_8 {dimension_numbers = #tpu.dot_dimension_numbers<[1], [0], [0], [1], [0, 0, 1, 1], [], []>} : vector<8x32xbf16>, vector<32x16xbf16>, vector<8x16xf32> -> vector<8x16xf32>
    %c0_9 = arith.constant 0 : index
    %c0_10 = arith.constant 0 : index
    %11 = vector.load %arg4[%c0_9, %c0_10] : memref<1x16xf32, #tpu.memory_space<vmem>>, vector<1x16xf32>
    %12 = vector.broadcast %11 : vector<1x16xf32> to vector<8x16xf32>
    %13 = arith.addf %10, %12 : vector<8x16xf32>
    %cst_11 = arith.constant 2.000000e-01 : f32
    %14 = vector.broadcast %cst_11 : f32 to vector<8x16xf32>
    %15 = arith.mulf %14, %13 : vector<8x16xf32>
    %16 = arith.maximumf %13, %15 : vector<8x16xf32>
    %17 = tpu.iota {dimensions = array<i32: 0>} : vector<8x1xi32>
    %c4_i32 = arith.constant 4 : i32
    %c0_i32 = arith.constant 0 : i32
    %18 = arith.cmpi eq, %c4_i32, %c0_i32 : i32
    %c1_i32 = arith.constant 1 : i32
    %19 = arith.select %18, %c1_i32, %c4_i32 : i32
    %20 = vector.broadcast %19 : i32 to vector<8x1xi32>
    %21 = arith.remsi %17, %20 : vector<8x1xi32>
    %c0_i32_12 = arith.constant 0 : i32
    %22 = vector.broadcast %c0_i32_12 : i32 to vector<8x1xi32>
    %23 = arith.cmpi ne, %21, %22 : vector<8x1xi32>
    %c0_i32_13 = arith.constant 0 : i32
    %24 = vector.broadcast %c0_i32_13 : i32 to vector<8x1xi32>
    %25 = arith.cmpi slt, %21, %24 : vector<8x1xi32>
    %c0_i32_14 = arith.constant 0 : i32
    %26 = arith.cmpi slt, %19, %c0_i32_14 : i32
    %27 = vector.broadcast %26 : i1 to vector<8x1xi1>
    %28 = vector.broadcast %27 : vector<8x1xi1> to vector<8x1xi1>
    %29 = arith.xori %25, %28 : vector<8x1xi1>
    %30 = arith.andi %29, %23 : vector<8x1xi1>
    %31 = vector.broadcast %19 : i32 to vector<8x1xi32>
    %32 = arith.addi %21, %31 : vector<8x1xi32>
    %33 = arith.select %30, %32, %21 : vector<8x1xi1>, vector<8x1xi32>
    %c0_i32_15 = arith.constant 0 : i32
    %34 = vector.broadcast %c0_i32_15 : i32 to vector<8x1xi32>
    %35 = arith.cmpi eq, %33, %34 : vector<8x1xi32>
    %c1_i32_16 = arith.constant 1 : i32
    %36 = tpu.dynamic_rotate %16 by %c1_i32_16 dim 0 : vector<8x16xf32>, i32 -> vector<8x16xf32>
    %cst_17 = arith.constant 0.000000e+00 : f32
    %37 = vector.shape_cast %35 : vector<8x1xi1> to vector<8x1xi1>
    %38 = vector.broadcast %37 : vector<8x1xi1> to vector<8x16xi1>
    %39 = vector.broadcast %cst_17 : f32 to vector<8x16xf32>
    %40 = arith.select %38, %39, %36 : vector<8x16xi1>, vector<8x16xf32>
    %c3_i32 = arith.constant 3 : i32
    %41 = vector.broadcast %c3_i32 : i32 to vector<8x1xi32>
    %42 = arith.cmpi eq, %33, %41 : vector<8x1xi32>
    %c7_i32 = arith.constant 7 : i32
    %43 = tpu.dynamic_rotate %8 by %c7_i32 dim 0 : vector<8x16xf32>, i32 -> vector<8x16xf32>
    %cst_18 = arith.constant 0.000000e+00 : f32
    %44 = vector.shape_cast %42 : vector<8x1xi1> to vector<8x1xi1>
    %45 = vector.broadcast %44 : vector<8x1xi1> to vector<8x16xi1>
    %46 = vector.broadcast %cst_18 : f32 to vector<8x16xf32>
    %47 = arith.select %45, %46, %43 : vector<8x16xi1>, vector<8x16xf32>
    %48 = tpu.concatenate %40, %8, %16, %47 in 1 : vector<8x16xf32>, vector<8x16xf32>, vector<8x16xf32>, vector<8x16xf32> -> vector<8x64xf32>
    %49 = arith.truncf %48 : vector<8x64xf32> to vector<8x64xbf16>
    %c0_19 = arith.constant 0 : index
    %c0_20 = arith.constant 0 : index
    %50 = vector.load %arg5[%c0_19, %c0_20] : memref<64x8xbf16, #tpu.memory_space<vmem>>, vector<64x8xbf16>
    %cst_21 = arith.constant dense<0.000000e+00> : vector<8x8xf32>
    %51 = tpu.matmul %49, %50, %cst_21 {dimension_numbers = #tpu.dot_dimension_numbers<[1], [0], [0], [1], [0, 0, 1, 1], [], []>} : vector<8x64xbf16>, vector<64x8xbf16>, vector<8x8xf32> -> vector<8x8xf32>
    %c0_22 = arith.constant 0 : index
    %c0_23 = arith.constant 0 : index
    %52 = vector.load %arg6[%c0_22, %c0_23] : memref<1x8xf32, #tpu.memory_space<vmem>>, vector<1x8xf32>
    %53 = vector.broadcast %52 : vector<1x8xf32> to vector<8x8xf32>
    %54 = arith.addf %51, %53 : vector<8x8xf32>
    %cst_24 = arith.constant 2.000000e-01 : f32
    %55 = vector.broadcast %cst_24 : f32 to vector<8x8xf32>
    %56 = arith.mulf %55, %54 : vector<8x8xf32>
    %57 = arith.maximumf %54, %56 : vector<8x8xf32>
    %58 = arith.truncf %57 : vector<8x8xf32> to vector<8x8xbf16>
    %c0_25 = arith.constant 0 : index
    %c0_26 = arith.constant 0 : index
    %59 = vector.load %arg7[%c0_25, %c0_26] : memref<8x8xbf16, #tpu.memory_space<vmem>>, vector<8x8xbf16>
    %cst_27 = arith.constant dense<0.000000e+00> : vector<8x8xf32>
    %60 = tpu.matmul %58, %59, %cst_27 {dimension_numbers = #tpu.dot_dimension_numbers<[1], [0], [0], [1], [0, 0, 1, 1], [], []>} : vector<8x8xbf16>, vector<8x8xbf16>, vector<8x8xf32> -> vector<8x8xf32>
    %c0_28 = arith.constant 0 : index
    %c0_29 = arith.constant 0 : index
    %61 = vector.load %arg8[%c0_28, %c0_29] : memref<1x8xf32, #tpu.memory_space<vmem>>, vector<1x8xf32>
    %62 = vector.broadcast %61 : vector<1x8xf32> to vector<8x8xf32>
    %63 = arith.addf %60, %62 : vector<8x8xf32>
    %c0_30 = arith.constant 0 : index
    %c0_31 = arith.constant 0 : index
    %64 = vector.load %arg9[%c0_30, %c0_31] : memref<8x8xf32, #tpu.memory_space<vmem>>, vector<8x8xf32>
    tpu.vector_store %arg9[%c0_30, %c0_31], %63 {strides = array<i32>} : memref<8x8xf32, #tpu.memory_space<vmem>>, vector<8x8xf32>,
    return
  }
  func.func @transform_0(%arg0: i32) -> (i32, i32) {
    %c0_i32 = arith.constant 0 : i32
    %c0_i32_0 = arith.constant 0 : i32
    return %arg0, %c0_i32 : i32, i32
  }
  func.func @transform_1(%arg0: i32) -> (i32, i32) {
    %c0_i32 = arith.constant 0 : i32
    %c0_i32_0 = arith.constant 0 : i32
    return %arg0, %c0_i32 : i32, i32
  }
  func.func @transform_2(%arg0: i32) -> (i32, i32) {
    %c0_i32 = arith.constant 0 : i32
    %c0_i32_0 = arith.constant 0 : i32
    %c0_i32_1 = arith.constant 0 : i32
    return %c0_i32, %c0_i32_0 : i32, i32
  }
  func.func @transform_3(%arg0: i32) -> (i32, i32) {
    %c0_i32 = arith.constant 0 : i32
    %c0_i32_0 = arith.constant 0 : i32
    %c0_i32_1 = arith.constant 0 : i32
    return %c0_i32, %c0_i32_0 : i32, i32
  }
  func.func @transform_4(%arg0: i32) -> (i32, i32) {
    %c0_i32 = arith.constant 0 : i32
    %c0_i32_0 = arith.constant 0 : i32
    %c0_i32_1 = arith.constant 0 : i32
    return %c0_i32, %c0_i32_0 : i32, i32
  }
  func.func @transform_5(%arg0: i32) -> (i32, i32) {
    %c0_i32 = arith.constant 0 : i32
    %c0_i32_0 = arith.constant 0 : i32
    %c0_i32_1 = arith.constant 0 : i32
    return %c0_i32, %c0_i32_0 : i32, i32
  }
  func.func @transform_6(%arg0: i32) -> (i32, i32) {
    %c0_i32 = arith.constant 0 : i32
    %c0_i32_0 = arith.constant 0 : i32
    %c0_i32_1 = arith.constant 0 : i32
    return %c0_i32, %c0_i32_0 : i32, i32
  }
  func.func @transform_7(%arg0: i32) -> (i32, i32) {
    %c0_i32 = arith.constant 0 : i32
    %c0_i32_0 = arith.constant 0 : i32
    %c0_i32_1 = arith.constant 0 : i32
    return %c0_i32, %c0_i32_0 : i32, i32
  }
  func.func @transform_8(%arg0: i32) -> (i32, i32) {
    %c0_i32 = arith.constant 0 : i32
    %c0_i32_0 = arith.constant 0 : i32
    return %arg0, %c0_i32 : i32, i32
  }
}

</mosaic_0001>

<llo_original>
// kernel: tpu_custom_call.1
$region0: #{tpu_custom_call.1}
  #allocation0 [shape = 'u32[]', space=smem, size = 0x4, offset = 0x4, fixed_abs, tag = 'smem constant byte address 0x4 - core index']
  #allocation1 [shape = 'u32[72,128]{1,0:T(1,128)}', space=vmem, size = 0x9000, scoped, tag = 'internal scratch']
  %s0 = inlined_call_operand.vmem [shape: bf16[8,32], index: 0, kind: input, shape index: {}]
  %s1 = inlined_call_operand.vmem [shape: bf16[8,32], index: 1, kind: input, shape index: {}]
  %s2 = inlined_call_operand.vmem [shape: bf16[32,16], index: 2, kind: input, shape index: {}]
  %s3 = inlined_call_operand.vmem [shape: f32[1,16], index: 3, kind: input, shape index: {}]
  %s4 = inlined_call_operand.vmem [shape: bf16[64,8], index: 4, kind: input, shape index: {}]
  %s5 = inlined_call_operand.vmem [shape: f32[1,8], index: 5, kind: input, shape index: {}]
  %s6 = inlined_call_operand.vmem [shape: bf16[8,8], index: 6, kind: input, shape index: {}]
  %s7 = inlined_call_operand.vmem [shape: f32[1,8], index: 7, kind: input, shape index: {}]
  %s8 = inlined_call_operand.hbm [shape: f32[8,8], index: 8, kind: output, shape index: {}]
  %s9 = sld [smem:[#allocation0]]
  $region42: #{tpu_custom_call.1} parent=0
    _
  %s11 = ssub.s32 1, %s9
  %s12 = scalar_select 0, %s11, %s9
  $region1: #{tpu_custom_call.1} parent=0
    #allocation2 [shape = 'u8[4096]{0}', space=vmem, size = 0x1000, scoped, tag = 'output window, operand 0, single buffered']
    #allocation3 [shape = 's32[1]{0}', space=sflag, size = 0x4, scoped, tag = 'scoped memory for tpu_custom_call.1']
    %13 = vsyncpa [#allocation3], 0
    // Predicated region
    $region2: #{tpu_custom_call.1} parent=1 // pred_check
      _
    $region3: #{tpu_custom_call.1} parent=1 // pred_check_branch
      %15 = sbr.rel (0) target = $region5
    $region4: #{tpu_custom_call.1} parent=1 // pred_region
      _
    $region5: #{tpu_custom_call.1} parent=1 // pred_fallthru
      _
    // Predicated region
    $region6: #{tpu_custom_call.1} parent=1 // pred_check
      _
    $region7: #{tpu_custom_call.1} parent=1 // pred_check_branch
      %17 = sbr.rel (0) target = $region9
    $region8: #{tpu_custom_call.1} parent=1 // pred_region
      _
    $region9: #{tpu_custom_call.1} parent=1 // pred_fallthru
      _
    // Predicated region
    $region10: #{tpu_custom_call.1} parent=1 // pred_check
      _
    $region11: #{tpu_custom_call.1} parent=1 // pred_check_branch
      %19 = sbr.rel (0) target = $region13
    $region12: #{tpu_custom_call.1} parent=1 // pred_region
      _
    $region13: #{tpu_custom_call.1} parent=1 // pred_fallthru
      _
    // Predicated region
    $region14: #{tpu_custom_call.1} parent=1 // pred_check
      _
    $region15: #{tpu_custom_call.1} parent=1 // pred_check_branch
      %21 = sbr.rel (0) target = $region17
    $region16: #{tpu_custom_call.1} parent=1 // pred_region
      _
    $region17: #{tpu_custom_call.1} parent=1 // pred_fallthru
      _
    // Predicated region
    $region18: #{tpu_custom_call.1} parent=1 // pred_check
      _
    $region19: #{tpu_custom_call.1} parent=1 // pred_check_branch
      %23 = sbr.rel (0) target = $region21
    $region20: #{tpu_custom_call.1} parent=1 // pred_region
      _
    $region21: #{tpu_custom_call.1} parent=1 // pred_fallthru
      _
    // Predicated region
    $region22: #{tpu_custom_call.1} parent=1 // pred_check
      _
    $region23: #{tpu_custom_call.1} parent=1 // pred_check_branch
      %25 = sbr.rel (0) target = $region25
    $region24: #{tpu_custom_call.1} parent=1 // pred_region
      _
    $region25: #{tpu_custom_call.1} parent=1 // pred_fallthru
      _
    // Predicated region
    $region26: #{tpu_custom_call.1} parent=1 // pred_check
      _
    $region27: #{tpu_custom_call.1} parent=1 // pred_check_branch
      %27 = sbr.rel (0) target = $region29
    $region28: #{tpu_custom_call.1} parent=1 // pred_region
      _
    $region29: #{tpu_custom_call.1} parent=1 // pred_fallthru
      _
    // Predicated region
    $region30: #{tpu_custom_call.1} parent=1 // pred_check
      _
    $region31: #{tpu_custom_call.1} parent=1 // pred_check_branch
      %29 = sbr.rel (0) target = $region33
    $region32: #{tpu_custom_call.1} parent=1 // pred_region
      _
    $region33: #{tpu_custom_call.1} parent=1 // pred_fallthru
      _
    %v31 = vld [vmem:[%s2] sm:$0xf]
    %v32 = vld [vmem:[%s2 + $0x4] sm:$0xf]
    %v33 = vld [vmem:[%s2 + $0x8] sm:$0xf]
    %v34 = vld [vmem:[%s2 + $0xc] sm:$0xf]
    %v35 = vld [vmem:[%s0] sm:$0xf]
    %v36 = vld [vmem:[%s3] sm:$0x1]
    %v38 = vperm.slane %v36, 0
    %v44 = vunpack.c.l.b16 %v31
    %v45 = vunpack.c.l.b16 %v32
    %v46 = vunpack.c.l.b16 %v33
    %v47 = vunpack.c.l.b16 %v34
    %v48 = vpack.c.b16 %v45, %v44
    %v49 = vpack.c.b16 %v47, %v46
    %vm52 = vcmask 261120
    %v54 = vsel %vm52, %v35, 0
    %56 = vmatpush.bf16.msra.mxu0 0
    %57 = vmatpush.bf16.msra.mxu0 0
    %58 = vmatpush.bf16.msra.mxu0 0
    %59 = vmatpush.bf16.msra.mxu0 0
    %60 = vmatpush.bf16.msra.mxu0 0
    %61 = vmatpush.bf16.msra.mxu0 0
    %62 = vmatpush.bf16.msra.mxu0 %v49
    %63 = vmatpush.bf16.msra.mxu0 %v48
    %64 = vmatmul.bf16.gmra.mxu0 %v54
    %v65 = vpop.f32.mrf.mxu0
    %v66 = vadd.f32 %v38, %v65
    %v67 = vpop.f32.mrf.mxu0
    %68 = vdwg.mxu0
    %v69 = vmul.f32 %v66, 0.2
    %v70 = vmax.f32 %v66, %v69
    %v71 = vld [vmem:[%s1] sm:$0xf]
    %v73 = vsel %vm52, %v71, 0
    %75 = vmatpush.bf16.msra.mxu0 0
    %76 = vmatpush.bf16.msra.mxu0 0
    %77 = vmatpush.bf16.msra.mxu0 0
    %78 = vmatpush.bf16.msra.mxu0 0
    %79 = vmatpush.bf16.msra.mxu0 0
    %80 = vmatpush.bf16.msra.mxu0 0
    %81 = vmatpush.bf16.msra.mxu0 %v49
    %82 = vmatpush.bf16.msra.mxu0 %v48
    %83 = vmatmul.bf16.gmra.mxu0 %v73
    %v84 = vpop.f32.mrf.mxu0
    %v85 = vadd.f32 %v38, %v84
    %v86 = vpop.f32.mrf.mxu0
    %87 = vdwg.mxu0
    %v88 = vmul.f32 %v85, 0.2
    %v89 = vmax.f32 %v85, %v88
    %v90 = vlaneseq
    %v91 = vshrl.u32 %v90, 7
    %vm92 = vcmp.lt.s32.totalorder %v91, 0
    %v93 = vsub.s32 0, %v91
    %v94 = vsel %vm92, %v93, %v91
    %v95 = vshrl.u32 %v94, 2
    %v96 = vand.u32 %v94, 3
    %v97 = vsub.s32 0, %v96
    %v98 = vsel %vm92, %v97, %v96
    %vm99 = vcmp.ne.s32.totalorder %v98, 0
    %vm100 = vcmp.lt.s32.totalorder %v98, 0
    %vm101 = vmand %vm100, %vm99
    %v102 = vadd.s32 %v98, 4
    %v103 = vsel %vm101, %v102, %v98
    %vm104 = vcmp.eq.s32.totalorder %v103, 0
    %v105 = vrot.slane %v89, 7
    %v106 = vsel %vm104, 1, 0
    %vm107 = vcmp.eq.s32.totalorder %v106, 1
    %v108 = vsel %vm107, 0.0, %v105
    %vm109 = vcmp.eq.s32.totalorder %v103, 3
    %v110 = vrot.slane %v70, 1
    %v111 = vsel %vm109, 1, 0
    %vm112 = vcmp.eq.s32.totalorder %v111, 1
    %v113 = vsel %vm112, 0.0, %v110
    %115 = vrot.lane.b32.xlu0 %v70, 16
    %v116 = vpop.permute.xlu0 %115
    %119 = vrot.lane.b32.xlu0 %v89, 32
    %v120 = vpop.permute.xlu0 %119
    %123 = vrot.lane.b32.xlu0 %v113, 48
    %v124 = vpop.permute.xlu0 %123
    %vm126 = vcmask 130048
    %v127 = vsel %vm126, %v108, %v116
    %v128 = vsel %vm52, %v127, %v120
    %vm129 = vcmask 392192
    %v130 = vsel %vm129, %v128, %v124
    %v131 = vpack.c.bf16 %v130, %v130
    %v132 = vld [vmem:[%s4] sm:$0xf]
    %v133 = vld [vmem:[%s4 + $0x4] sm:$0xf]
    %v134 = vld [vmem:[%s4 + $0x8] sm:$0xf]
    %v135 = vld [vmem:[%s4 + $0xc] sm:$0xf]
    %v136 = vld [vmem:[%s4 + $0x10] sm:$0xf]
    %v137 = vld [vmem:[%s4 + $0x14] sm:$0xf]
    %v138 = vld [vmem:[%s4 + $0x18] sm:$0xf]
    %v139 = vld [vmem:[%s4 + $0x1c] sm:$0xf]
    %v140 = vld [vmem:[%s5] sm:$0x1]
    %v142 = vperm.slane %v140, 0
    %v152 = vunpack.c.l.b16 %v132
    %v153 = vunpack.c.l.b16 %v133
    %v154 = vunpack.c.l.b16 %v134
    %v155 = vunpack.c.l.b16 %v135
    %v156 = vunpack.c.l.b16 %v136
    %v157 = vunpack.c.l.b16 %v137
    %v158 = vunpack.c.l.b16 %v138
    %v159 = vunpack.c.l.b16 %v139
    %v160 = vpack.c.b16 %v153, %v152
    %v161 = vpack.c.b16 %v155, %v154
    %v162 = vpack.c.b16 %v157, %v156
    %v163 = vpack.c.b16 %v159, %v158
    %vm168 = vcmask 523264
    %v170 = vsel %vm168, %v131, 0
    %172 = vmatpush.bf16.msra.mxu0 0
    %173 = vmatpush.bf16.msra.mxu0 0
    %174 = vmatpush.bf16.msra.mxu0 0
    %175 = vmatpush.bf16.msra.mxu0 0
    %176 = vmatpush.bf16.msra.mxu0 %v163
    %177 = vmatpush.bf16.msra.mxu0 %v162
    %178 = vmatpush.bf16.msra.mxu0 %v161
    %179 = vmatpush.bf16.msra.mxu0 %v160
    %180 = vmatmul.bf16.gmra.mxu0 %v170
    %v181 = vpop.f32.mrf.mxu0
    %v182 = vadd.f32 %v142, %v181
    %v183 = vpop.f32.mrf.mxu0
    %184 = vdwg.mxu0
    %v185 = vmul.f32 %v182, 0.2
    %v186 = vmax.f32 %v182, %v185
    %v187 = vpack.c.bf16 %v186, %v186
    %v188 = vld [vmem:[%s6] sm:$0xf]
    %v189 = vld [vmem:[%s7] sm:$0x1]
    %v191 = vperm.slane %v189, 0
    %vm193 = vcmask 64512
    %v195 = vsel %vm193, %v187, 0
    %vm197 = vcmask 1043456
    %v199 = vsel %vm197, %v188, 0
    %201 = vmatpush.bf16.msra.mxu0 0
    %202 = vmatpush.bf16.msra.mxu0 0
    %203 = vmatpush.bf16.msra.mxu0 0
    %204 = vmatpush.bf16.msra.mxu0 0
    %205 = vmatpush.bf16.msra.mxu0 0
    %206 = vmatpush.bf16.msra.mxu0 0
    %207 = vmatpush.bf16.msra.mxu0 0
    %208 = vmatpush.bf16.msra.mxu0 %v199
    %209 = vmatmul.bf16.gmra.mxu0 %v195
    %v210 = vpop.f32.mrf.mxu0
    %v211 = vadd.f32 %v191, %v210
    %v212 = vpop.f32.mrf.mxu0
    %213 = vdwg.mxu0
    %214 = vst.msk [vmem:[#allocation2] sm:$0xff] %vm193, %v211
    // Predicated region
    $region34: #{tpu_custom_call.1} parent=1 // pred_check
      _
    $region35: #{tpu_custom_call.1} parent=1 // pred_check_branch
      %216 = sbr.rel (0) target = $region37
    $region36: #{tpu_custom_call.1} parent=1 // pred_region
      %218 = vsyncadd [#allocation3], 0
      %s220 = sshll.u32 [#allocation2], 4
      %s221 = int_to_ptr.vmem [resolvable:$true] %s220
      %s222 = sshll.u32 %s8, 4
      %s223 = int_to_ptr.hbm [resolvable:$true] %s222
      %225 = dma.vmem_to_hbm [thread:$0]  %s221, 128, %s223, [#allocation3]
    $region37: #{tpu_custom_call.1} parent=1 // pred_fallthru
      _
    // Predicated region
    $region38: #{tpu_custom_call.1} parent=1 // pred_check
      _
    $region39: #{tpu_custom_call.1} parent=1 // pred_check_branch
      %227 = sbr.rel (0) target = $region41
    $region40: #{tpu_custom_call.1} parent=1 // pred_region
      %229 = dma.done [#allocation3], 128
    $region41: #{tpu_custom_call.1} parent=1 // pred_fallthru
      _
    %230 = vsyncpa [#allocation3], 1

</llo_original>
